<compile_context>
chip_gen: v7x
topology: tpu7x:2x2x1
jax: 0.10.0
libtpu: 0.0.40
codegen_flags: <defaults>
</compile_context>

<pallas_src>
import jax
import jax.numpy as jnp
from jax.experimental import pallas as pl
from jax.experimental.pallas import tpu as pltpu


def _round_up(x, m):
    return ((x + m - 1) // m) * m


# ---------------------------------------------------------------------------
# Kernel 1: fused embedding gather + flatten + fc1 + ReLU (single invocation).
# ---------------------------------------------------------------------------
def fc1_gather_kernel(ids_ref, emb_ref, w1_ref, b1_ref, h_ref, x_sc):
    # ids_ref : VMEM (B, C) int32   token ids (padded batch rows hold id 0)
    # emb_ref : VMEM (V, E) bf16    whole embedding table (resident)
    # w1_ref  : VMEM (D, H) bf16    fc1 weight, pre-transposed, D = C*E
    # b1_ref  : VMEM (1, H) f32
    # h_ref   : VMEM (B, H) bf16    output hidden activations
    # x_sc    : VMEM (B, D) bf16    flattened gathered embeddings (lane-dense)
    B, C = ids_ref.shape
    V, E = emb_ref.shape

    emb = emb_ref[...]                                            # (V, E) bf16
    ids = ids_ref[...]                                            # (B, C) i32
    voc_iota = jax.lax.broadcasted_iota(jnp.int32, (B, V), 1)

    # One-hot MXU gather per context position, written into the flattened
    # scratch at lane offset c*E  (x.view(B, -1) is the DMA-free store layout).
    for c in range(C):
        onehot = (voc_iota == ids[:, c:c + 1]).astype(emb.dtype)  # (B, V)
        x_c = jnp.dot(onehot, emb, preferred_element_type=jnp.float32)
        x_sc[:, c * E:(c + 1) * E] = x_c.astype(x_sc.dtype)       # exact bf16

    # Single fc1 matmul with K = C*E, f32 accumulation, write hidden as bf16.
    h = jnp.dot(x_sc[...], w1_ref[...], preferred_element_type=jnp.float32)
    h_ref[...] = jnp.maximum(h + b1_ref[...], 0.0).astype(h_ref.dtype)


# ---------------------------------------------------------------------------
# Kernel 2: fc2 + ReLU, tiled over vocabulary.  No carried state -> the vocab
# grid axis is safely "parallel" (dual TensorCore on v7x).
# ---------------------------------------------------------------------------
def fc2_kernel(h_ref, w2_ref, b2_ref, o_ref):
    # h_ref  : VMEM (B, H)      bf16 (resident, constant index map)
    # w2_ref : VMEM (H, tile_v) bf16 tile (streamed from HBM)
    # b2_ref : VMEM (1, tile_v) f32 tile
    # o_ref  : VMEM (B, tile_v) f32 tile
    y = jnp.dot(h_ref[...], w2_ref[...], preferred_element_type=jnp.float32)
    o_ref[...] = jnp.maximum(y + b2_ref[...], 0.0).astype(o_ref.dtype)


# ---------------------------------------------------------------------------
# One-time parameter preparation (transpose to (in,out), bf16 cast, vocab pad).
# ---------------------------------------------------------------------------
def prepare_params(embedding, w1, b1, w2, b2,
                   compute_dtype=jnp.bfloat16, tile_v=None):
    """embedding: f32[V, E]; w1: f32[H, D]; b1: f32[H]; w2: f32[V, H]; b2: f32[V]."""
    V, _E = embedding.shape
    if tile_v is None:
        # Lane-dense, multiple of 256 (fills v6e/v7x 256-wide MXU; fine on v5e),
        # large enough to sit near the HBM roofline for big vocabularies.
        tile_v = min(_round_up(V, 256), 2048)
    assert tile_v % 256 == 0
    V_pad = _round_up(V, tile_v)

    w2_t = jnp.asarray(w2.T, dtype=compute_dtype)                 # (H, V)
    b2_r = jnp.asarray(b2, dtype=jnp.float32).reshape(1, -1)      # (1, V)
    if V_pad != V:
        w2_t = jnp.pad(w2_t, ((0, 0), (0, V_pad - V)))
        b2_r = jnp.pad(b2_r, ((0, 0), (0, V_pad - V)))

    return {
        "embedding": jnp.asarray(embedding, dtype=compute_dtype), # (V, E)
        "w1_t": jnp.asarray(w1.T, dtype=compute_dtype),           # (D, H)
        "b1": jnp.asarray(b1, dtype=jnp.float32).reshape(1, -1),  # (1, H)
        "w2_t": w2_t,                                             # (H, V_pad)
        "b2": b2_r,                                               # (1, V_pad)
        "num_voc": V,
        "tile_v": tile_v,
    }


# ---------------------------------------------------------------------------
# Forward pass matching CBOW.forward, batched over context windows.
# ---------------------------------------------------------------------------
def cbow_forward(token_ids, params):
    """token_ids: int32[2*ctx] (-> (1,V) like the module) or int32[B, 2*ctx]."""
    emb = params["embedding"]
    w1_t = params["w1_t"]
    b1 = params["b1"]
    w2_t = params["w2_t"]
    b2 = params["b2"]
    V = params["num_voc"]
    tile_v = params["tile_v"]

    if token_ids.ndim == 1:
        token_ids = token_ids[None, :]
    B, C = token_ids.shape
    Vr, E = emb.shape
    D, H = w1_t.shape
    V_pad = w2_t.shape[1]
    assert D == C * E, "context_size/embedding_size inconsistent with fc1"

    # Pad batch to a multiple of 16 (bf16 sublane packing); padded rows use id 0.
    B_pad = max(16, _round_up(B, 16))
    ids = token_ids.astype(jnp.int32)
    if B_pad != B:
        ids = jnp.pad(ids, ((0, B_pad - B), (0, 0)))

    # --- Kernel 1: gather + fc1 + ReLU -> h (B_pad, H) bf16 ------------------
    fc1_cost = pl.CostEstimate(
        flops=2 * B_pad * Vr * E * C + 2 * B_pad * D * H,
        transcendentals=0,
        bytes_accessed=(Vr * E * 2 + D * H * 2 + B_pad * C * 4
                        + H * 4 + B_pad * H * 2),
    )
    h = pl.pallas_call(
        fc1_gather_kernel,
        out_shape=jax.ShapeDtypeStruct((B_pad, H), jnp.bfloat16),
        scratch_shapes=[pltpu.VMEM((B_pad, D), jnp.bfloat16)],
        cost_estimate=fc1_cost,
    )(ids, emb, w1_t, b1)

    # --- Kernel 2: fc2 + ReLU, vocab-tiled, "parallel" grid ------------------
    num_tiles = V_pad // tile_v
    w2_spec = pl.BlockSpec((H, tile_v), lambda j: (0, j))
    if num_tiles >= 3:
        # w2 streaming dominates; a 3rd buffer hides step-boundary DMA bubbles.
        w2_spec = pl.BlockSpec((H, tile_v), lambda j: (0, j),
                               pipeline_mode=pl.Buffered(3))

    # VMEM budget derived from actual buffer sizes (keeps v7x's 64 MiB happy).
    fc2_vmem = (2 * B_pad * H * 2          # h (double-buffered, bf16)
                + 3 * H * tile_v * 2       # w2 tiles (up to 3 buffers, bf16)
                + 2 * tile_v * 4           # b2 tiles (f32)
                + 2 * B_pad * tile_v * 4)  # out tiles (f32)
    vmem_limit = int(min(64 * 1024 * 1024, max(4 * 1024 * 1024, 2 * fc2_vmem)))

    fc2_cost = pl.CostEstimate(
        flops=2 * B_pad * H * V_pad,
        transcendentals=0,
        bytes_accessed=(H * V_pad * 2 + V_pad * 4
                        + B_pad * H * 2 + B_pad * V_pad * 4),
    )
    out = pl.pallas_call(
        fc2_kernel,
        grid=(num_tiles,),
        in_specs=[
            pl.BlockSpec((B_pad, H), lambda j: (0, 0)),   # h (resident)
            w2_spec,                                      # w2 tile (streamed)
            pl.BlockSpec((1, tile_v), lambda j: (0, j)),  # b2 tile
        ],
        out_specs=pl.BlockSpec((B_pad, tile_v), lambda j: (0, j)),
        out_shape=jax.ShapeDtypeStruct((B_pad, V_pad), jnp.float32),
        compiler_params=pltpu.CompilerParams(
            dimension_semantics=("parallel",),
            vmem_limit_bytes=vmem_limit,
        ),
        cost_estimate=fc2_cost,
    )(h, w2_t, b2)

    return out[:B, :V]


def reference_forward(token_ids, embedding, w1, b1, w2, b2):
    if token_ids.ndim == 1:
        token_ids = token_ids[None, :]
    x = jnp.take(embedding, token_ids, axis=0).reshape(token_ids.shape[0], -1)
    h = jnp.maximum(x @ w1.T + b1, 0.0)
    return jnp.maximum(h @ w2.T + b2, 0.0)


if __name__ == "__main__":
    # Sizes consistent with the module's constructor (kept small).
    num_voc = 256
    num_hidden = 128
    context_size = 2
    embedding_size = 32
    D = 2 * context_size * embedding_size  # 128
    batch = 32                             # batch of context windows

    key = jax.random.PRNGKey(0)
    k_emb, k_w1, k_b1, k_w2, k_b2, k_ids = jax.random.split(key, 6)

    embedding = jax.random.normal(k_emb, (num_voc, embedding_size), jnp.float32) * 0.1
    w1 = jax.random.normal(k_w1, (num_hidden, D), jnp.float32) * 0.05
    b1 = jax.random.normal(k_b1, (num_hidden,), jnp.float32) * 0.05
    w2 = jax.random.normal(k_w2, (num_voc, num_hidden), jnp.float32) * 0.05
    b2 = jax.random.normal(k_b2, (num_voc,), jnp.float32) * 0.05

    token_ids = jax.random.randint(
        k_ids, (batch, 2 * context_size), 0, num_voc, jnp.int32)

    params = prepare_params(embedding, w1, b1, w2, b2)

    # Batched forward (each row == one CBOW.forward call).
    out = jax.block_until_ready(cbow_forward(token_ids, params))
    ref = reference_forward(token_ids, embedding, w1, b1, w2, b2)
    assert out.shape == (batch, num_voc), out.shape
    assert jnp.allclose(out, ref, atol=2e-2, rtol=2e-2), "batched mismatch"

    # Single-window path: exactly the module's (1, num_voc) output shape.
    out1 = jax.block_until_ready(cbow_forward(token_ids[0], params))
    assert out1.shape == (1, num_voc), out1.shape
    assert jnp.allclose(out1, ref[:1], atol=2e-2, rtol=2e-2), "single mismatch"

    # Larger-vocab config: exercises multi-tile fc2, Buffered(3) w2 stream and
    # the "parallel" vocab axis.
    num_voc2 = 1024
    k2 = jax.random.split(jax.random.PRNGKey(1), 6)
    emb2 = jax.random.normal(k2[0], (num_voc2, embedding_size), jnp.float32) * 0.1
    w1b = jax.random.normal(k2[1], (num_hidden, D), jnp.float32) * 0.05
    b1b = jax.random.normal(k2[2], (num_hidden,), jnp.float32) * 0.05
    w2b = jax.random.normal(k2[3], (num_voc2, num_hidden), jnp.float32) * 0.05
    b2b = jax.random.normal(k2[4], (num_voc2,), jnp.float32) * 0.05
    ids2 = jax.random.randint(
        k2[5], (batch, 2 * context_size), 0, num_voc2, jnp.int32)

    params2 = prepare_params(emb2, w1b, b1b, w2b, b2b, tile_v=256)
    out2 = jax.block_until_ready(cbow_forward(ids2, params2))
    ref2 = reference_forward(ids2, emb2, w1b, b1b, w2b, b2b)
    assert out2.shape == (batch, num_voc2), out2.shape
    assert jnp.allclose(out2, ref2, atol=2e-2, rtol=2e-2), "multi-tile mismatch"

    print("KERNEL_OK")
</pallas_src>

<mosaic_0001>
module attributes {stable_mosaic.version = 11 : i64} {
  func.func @fc1_gather_kernel(%arg0: memref<32x4xi32, #tpu.memory_space<vmem>>, %arg1: memref<256x32xbf16, #tpu.memory_space<vmem>>, %arg2: memref<128x128xbf16, #tpu.memory_space<vmem>>, %arg3: memref<1x128xf32, #tpu.memory_space<vmem>>, %arg4: memref<32x128xbf16, #tpu.memory_space<vmem>>, %arg5: memref<32x128xbf16, #tpu.memory_space<vmem>>) attributes {dimension_semantics = [], scalar_prefetch = 0 : i64, scratch_operands = 1 : i64, tpu.core_type = #tpu.core_type<tc>} {
    %c0 = arith.constant 0 : index
    %c0_0 = arith.constant 0 : index
    %0 = vector.load %arg1[%c0, %c0_0] : memref<256x32xbf16, #tpu.memory_space<vmem>>, vector<256x32xbf16>
    %c0_1 = arith.constant 0 : index
    %c0_2 = arith.constant 0 : index
    %1 = vector.load %arg0[%c0_1, %c0_2] : memref<32x4xi32, #tpu.memory_space<vmem>>, vector<32x4xi32>
    %2 = tpu.iota {dimensions = array<i32: 1>} : vector<32x256xi32>
    %3 = vector.extract_strided_slice %1 {offsets = [0, 0], sizes = [32, 1], strides = [1, 1]} : vector<32x4xi32> to vector<32x1xi32>
    %4 = vector.broadcast %3 : vector<32x1xi32> to vector<32x256xi32>
    %5 = arith.cmpi eq, %2, %4 : vector<32x256xi32>
    %6 = arith.extui %5 : vector<32x256xi1> to vector<32x256xi32>
    %7 = arith.sitofp %6 : vector<32x256xi32> to vector<32x256xf32>
    %8 = arith.truncf %7 : vector<32x256xf32> to vector<32x256xbf16>
    %cst = arith.constant dense<0.000000e+00> : vector<32x32xf32>
    %9 = tpu.matmul %8, %0, %cst {dimension_numbers = #tpu.dot_dimension_numbers<[1], [0], [0], [1], [0, 0, 1, 1], [], []>} : vector<32x256xbf16>, vector<256x32xbf16>, vector<32x32xf32> -> vector<32x32xf32>
    %10 = arith.truncf %9 : vector<32x32xf32> to vector<32x32xbf16>
    %c0_3 = arith.constant 0 : index
    %c0_4 = arith.constant 0 : index
    %11 = vector.load %arg5[%c0_3, %c0_4] : memref<32x128xbf16, #tpu.memory_space<vmem>>, vector<32x32xbf16>
    tpu.vector_store %arg5[%c0_3, %c0_4], %10 {strides = array<i32>} : memref<32x128xbf16, #tpu.memory_space<vmem>>, vector<32x32xbf16>,
    %12 = vector.extract_strided_slice %1 {offsets = [0, 1], sizes = [32, 1], strides = [1, 1]} : vector<32x4xi32> to vector<32x1xi32>
    %13 = vector.broadcast %12 : vector<32x1xi32> to vector<32x256xi32>
    %14 = arith.cmpi eq, %2, %13 : vector<32x256xi32>
    %15 = arith.extui %14 : vector<32x256xi1> to vector<32x256xi32>
    %16 = arith.sitofp %15 : vector<32x256xi32> to vector<32x256xf32>
    %17 = arith.truncf %16 : vector<32x256xf32> to vector<32x256xbf16>
    %cst_5 = arith.constant dense<0.000000e+00> : vector<32x32xf32>
    %18 = tpu.matmul %17, %0, %cst_5 {dimension_numbers = #tpu.dot_dimension_numbers<[1], [0], [0], [1], [0, 0, 1, 1], [], []>} : vector<32x256xbf16>, vector<256x32xbf16>, vector<32x32xf32> -> vector<32x32xf32>
    %19 = arith.truncf %18 : vector<32x32xf32> to vector<32x32xbf16>
    %c0_6 = arith.constant 0 : index
    %c32 = arith.constant 32 : index
    %20 = vector.load %arg5[%c0_6, %c32] : memref<32x128xbf16, #tpu.memory_space<vmem>>, vector<32x32xbf16>
    tpu.vector_store %arg5[%c0_6, %c32], %19 {strides = array<i32>} : memref<32x128xbf16, #tpu.memory_space<vmem>>, vector<32x32xbf16>,
    %21 = vector.extract_strided_slice %1 {offsets = [0, 2], sizes = [32, 1], strides = [1, 1]} : vector<32x4xi32> to vector<32x1xi32>
    %22 = vector.broadcast %21 : vector<32x1xi32> to vector<32x256xi32>
    %23 = arith.cmpi eq, %2, %22 : vector<32x256xi32>
    %24 = arith.extui %23 : vector<32x256xi1> to vector<32x256xi32>
    %25 = arith.sitofp %24 : vector<32x256xi32> to vector<32x256xf32>
    %26 = arith.truncf %25 : vector<32x256xf32> to vector<32x256xbf16>
    %cst_7 = arith.constant dense<0.000000e+00> : vector<32x32xf32>
    %27 = tpu.matmul %26, %0, %cst_7 {dimension_numbers = #tpu.dot_dimension_numbers<[1], [0], [0], [1], [0, 0, 1, 1], [], []>} : vector<32x256xbf16>, vector<256x32xbf16>, vector<32x32xf32> -> vector<32x32xf32>
    %28 = arith.truncf %27 : vector<32x32xf32> to vector<32x32xbf16>
    %c0_8 = arith.constant 0 : index
    %c64 = arith.constant 64 : index
    %29 = vector.load %arg5[%c0_8, %c64] : memref<32x128xbf16, #tpu.memory_space<vmem>>, vector<32x32xbf16>
    tpu.vector_store %arg5[%c0_8, %c64], %28 {strides = array<i32>} : memref<32x128xbf16, #tpu.memory_space<vmem>>, vector<32x32xbf16>,
    %30 = vector.extract_strided_slice %1 {offsets = [0, 3], sizes = [32, 1], strides = [1, 1]} : vector<32x4xi32> to vector<32x1xi32>
    %31 = vector.broadcast %30 : vector<32x1xi32> to vector<32x256xi32>
    %32 = arith.cmpi eq, %2, %31 : vector<32x256xi32>
    %33 = arith.extui %32 : vector<32x256xi1> to vector<32x256xi32>
    %34 = arith.sitofp %33 : vector<32x256xi32> to vector<32x256xf32>
    %35 = arith.truncf %34 : vector<32x256xf32> to vector<32x256xbf16>
    %cst_9 = arith.constant dense<0.000000e+00> : vector<32x32xf32>
    %36 = tpu.matmul %35, %0, %cst_9 {dimension_numbers = #tpu.dot_dimension_numbers<[1], [0], [0], [1], [0, 0, 1, 1], [], []>} : vector<32x256xbf16>, vector<256x32xbf16>, vector<32x32xf32> -> vector<32x32xf32>
    %37 = arith.truncf %36 : vector<32x32xf32> to vector<32x32xbf16>
    %c0_10 = arith.constant 0 : index
    %c96 = arith.constant 96 : index
    %38 = vector.load %arg5[%c0_10, %c96] : memref<32x128xbf16, #tpu.memory_space<vmem>>, vector<32x32xbf16>
    tpu.vector_store %arg5[%c0_10, %c96], %37 {strides = array<i32>} : memref<32x128xbf16, #tpu.memory_space<vmem>>, vector<32x32xbf16>,
    %c0_11 = arith.constant 0 : index
    %c0_12 = arith.constant 0 : index
    %39 = vector.load %arg5[%c0_11, %c0_12] : memref<32x128xbf16, #tpu.memory_space<vmem>>, vector<32x128xbf16>
    %c0_13 = arith.constant 0 : index
    %c0_14 = arith.constant 0 : index
    %40 = vector.load %arg2[%c0_13, %c0_14] : memref<128x128xbf16, #tpu.memory_space<vmem>>, vector<128x128xbf16>
    %cst_15 = arith.constant dense<0.000000e+00> : vector<32x128xf32>
    %41 = tpu.matmul %39, %40, %cst_15 {dimension_numbers = #tpu.dot_dimension_numbers<[1], [0], [0], [1], [0, 0, 1, 1], [], []>} : vector<32x128xbf16>, vector<128x128xbf16>, vector<32x128xf32> -> vector<32x128xf32>
    %c0_16 = arith.constant 0 : index
    %c0_17 = arith.constant 0 : index
    %42 = vector.load %arg3[%c0_16, %c0_17] : memref<1x128xf32, #tpu.memory_space<vmem>>, vector<1x128xf32>
    %43 = vector.broadcast %42 : vector<1x128xf32> to vector<32x128xf32>
    %44 = arith.addf %41, %43 : vector<32x128xf32>
    %cst_18 = arith.constant 0.000000e+00 : f32
    %45 = vector.broadcast %cst_18 : f32 to vector<32x128xf32>
    %46 = arith.maximumf %44, %45 : vector<32x128xf32>
    %47 = arith.truncf %46 : vector<32x128xf32> to vector<32x128xbf16>
    %c0_19 = arith.constant 0 : index
    %c0_20 = arith.constant 0 : index
    %48 = vector.load %arg4[%c0_19, %c0_20] : memref<32x128xbf16, #tpu.memory_space<vmem>>, vector<32x128xbf16>
    tpu.vector_store %arg4[%c0_19, %c0_20], %47 {strides = array<i32>} : memref<32x128xbf16, #tpu.memory_space<vmem>>, vector<32x128xbf16>,
    return
  }
}

</mosaic_0001>

<llo_original>
// kernel: tpu_custom_call.1
$region0: #{tpu_custom_call.1}
  #allocation0 [shape = 'u32[]', space=smem, size = 0x4, offset = 0x4, fixed_abs, tag = 'smem constant byte address 0x4 - core index']
  #allocation1 [shape = 'u32[144,128]{1,0:T(1,128)}', space=vmem, size = 0x12000, scoped, tag = 'internal scratch']
  #allocation2 [shape = 'bf16[32,128]{1,0:T(16,128)(2,1)}', space=vmem, size = 0x2000, scoped, tag = 'scratch operand']
  %s0 = inlined_call_operand.vmem [shape: s32[32,4], index: 0, kind: input, shape index: {}]
  %s1 = inlined_call_operand.vmem [shape: bf16[256,32], index: 1, kind: input, shape index: {}]
  %s2 = inlined_call_operand.vmem [shape: bf16[128,128], index: 2, kind: input, shape index: {}]
  %s3 = inlined_call_operand.vmem [shape: f32[1,128], index: 3, kind: input, shape index: {}]
  %s4 = inlined_call_operand.hbm [shape: bf16[32,128], index: 4, kind: output, shape index: {}]
  %s5 = sld [smem:[#allocation0]]
  $region26: #{tpu_custom_call.1} parent=0
    _
  %s7 = ssub.s32 1, %s5
  %s8 = scalar_select 0, %s7, %s5
  $region1: #{tpu_custom_call.1} parent=0
    #allocation3 [shape = 'u8[8192]{0}', space=vmem, size = 0x2000, scoped, tag = 'output window, operand 0, single buffered']
    #allocation4 [shape = 's32[1]{0}', space=sflag, size = 0x4, scoped, tag = 'scoped memory for tpu_custom_call.1']
    %9 = vsyncpa [#allocation4], 0
    // Predicated region
    $region2: #{tpu_custom_call.1} parent=1 // pred_check
      _
    $region3: #{tpu_custom_call.1} parent=1 // pred_check_branch
      %11 = sbr.rel (0) target = $region5
    $region4: #{tpu_custom_call.1} parent=1 // pred_region
      _
    $region5: #{tpu_custom_call.1} parent=1 // pred_fallthru
      _
    // Predicated region
    $region6: #{tpu_custom_call.1} parent=1 // pred_check
      _
    $region7: #{tpu_custom_call.1} parent=1 // pred_check_branch
      %13 = sbr.rel (0) target = $region9
    $region8: #{tpu_custom_call.1} parent=1 // pred_region
      _
    $region9: #{tpu_custom_call.1} parent=1 // pred_fallthru
      _
    // Predicated region
    $region10: #{tpu_custom_call.1} parent=1 // pred_check
      _
    $region11: #{tpu_custom_call.1} parent=1 // pred_check_branch
      %15 = sbr.rel (0) target = $region13
    $region12: #{tpu_custom_call.1} parent=1 // pred_region
      _
    $region13: #{tpu_custom_call.1} parent=1 // pred_fallthru
      _
    // Predicated region
    $region14: #{tpu_custom_call.1} parent=1 // pred_check
      _
    $region15: #{tpu_custom_call.1} parent=1 // pred_check_branch
      %17 = sbr.rel (0) target = $region17
    $region16: #{tpu_custom_call.1} parent=1 // pred_region
      _
    $region17: #{tpu_custom_call.1} parent=1 // pred_fallthru
      _
    %v19 = vld [vmem:[%s1] sm:$0xf]
    %v20 = vld [vmem:[%s1 + $0x4] sm:$0xf]
    %v21 = vld [vmem:[%s1 + $0x8] sm:$0xf]
    %v22 = vld [vmem:[%s1 + $0xc] sm:$0xf]
    %v23 = vld [vmem:[%s1 + $0x10] sm:$0xf]
    %v24 = vld [vmem:[%s1 + $0x14] sm:$0xf]
    %v25 = vld [vmem:[%s1 + $0x18] sm:$0xf]
    %v26 = vld [vmem:[%s1 + $0x1c] sm:$0xf]
    %v27 = vld [vmem:[%s1 + $0x20] sm:$0xf]
    %v28 = vld [vmem:[%s1 + $0x24] sm:$0xf]
    %v29 = vld [vmem:[%s1 + $0x28] sm:$0xf]
    %v30 = vld [vmem:[%s1 + $0x2c] sm:$0xf]
    %v31 = vld [vmem:[%s1 + $0x30] sm:$0xf]
    %v32 = vld [vmem:[%s1 + $0x34] sm:$0xf]
    %v33 = vld [vmem:[%s1 + $0x38] sm:$0xf]
    %v34 = vld [vmem:[%s1 + $0x3c] sm:$0xf]
    %v35 = vld [vmem:[%s1 + $0x40] sm:$0xf]
    %v36 = vld [vmem:[%s1 + $0x44] sm:$0xf]
    %v37 = vld [vmem:[%s1 + $0x48] sm:$0xf]
    %v38 = vld [vmem:[%s1 + $0x4c] sm:$0xf]
    %v39 = vld [vmem:[%s1 + $0x50] sm:$0xf]
    %v40 = vld [vmem:[%s1 + $0x54] sm:$0xf]
    %v41 = vld [vmem:[%s1 + $0x58] sm:$0xf]
    %v42 = vld [vmem:[%s1 + $0x5c] sm:$0xf]
    %v43 = vld [vmem:[%s1 + $0x60] sm:$0xf]
    %v44 = vld [vmem:[%s1 + $0x64] sm:$0xf]
    %v45 = vld [vmem:[%s1 + $0x68] sm:$0xf]
    %v46 = vld [vmem:[%s1 + $0x6c] sm:$0xf]
    %v47 = vld [vmem:[%s1 + $0x70] sm:$0xf]
    %v48 = vld [vmem:[%s1 + $0x74] sm:$0xf]
    %v49 = vld [vmem:[%s1 + $0x78] sm:$0xf]
    %v50 = vld [vmem:[%s1 + $0x7c] sm:$0xf]
    %v51 = vld [vmem:[%s0] sm:$0xff]
    %v52 = vld [vmem:[%s0 + $0x8] sm:$0xff]
    %v53 = vld [vmem:[%s0 + $0x10] sm:$0xff]
    %v54 = vld [vmem:[%s0 + $0x18] sm:$0xff]
    %v55 = vlaneseq
    %v56 = vand.u32 %v55, 127
    %v57 = vadd.s32 %v56, 128
    %58 = vset.pattern.permute.xlu0 0
    %59 = vperm.xlu0 %58, %v51
    %v60 = vpop.permute.xlu0 %59
    %61 = vset.pattern.permute.xlu0 0
    %62 = vperm.xlu0 %61, %v52
    %v63 = vpop.permute.xlu0 %62
    %64 = vset.pattern.permute.xlu0 0
    %65 = vperm.xlu0 %64, %v53
    %v66 = vpop.permute.xlu0 %65
    %67 = vset.pattern.permute.xlu0 0
    %68 = vperm.xlu0 %67, %v54
    %v69 = vpop.permute.xlu0 %68
    %vm70 = vcmp.eq.s32.totalorder %v56, %v60
    %vm71 = vcmp.eq.s32.totalorder %v57, %v60
    %vm72 = vcmp.eq.s32.totalorder %v56, %v63
    %vm73 = vcmp.eq.s32.totalorder %v57, %v63
    %vm74 = vcmp.eq.s32.totalorder %v56, %v66
    %vm75 = vcmp.eq.s32.totalorder %v57, %v66
    %vm76 = vcmp.eq.s32.totalorder %v56, %v69
    %vm77 = vcmp.eq.s32.totalorder %v57, %v69
    %v78 = vsel %vm70, 1, 0
    %v79 = vsel %vm71, 1, 0
    %v80 = vsel %vm72, 1, 0
    %v81 = vsel %vm73, 1, 0
    %v82 = vsel %vm74, 1, 0
    %v83 = vsel %vm75, 1, 0
    %v84 = vsel %vm76, 1, 0
    %v85 = vsel %vm77, 1, 0
    %v86 = vcvt.s32.f32 %v78
    %v87 = vcvt.s32.f32 %v79
    %v88 = vcvt.s32.f32 %v80
    %v89 = vcvt.s32.f32 %v81
    %v90 = vcvt.s32.f32 %v82
    %v91 = vcvt.s32.f32 %v83
    %v92 = vcvt.s32.f32 %v84
    %v93 = vcvt.s32.f32 %v85
    %v94 = vpack.c.bf16 %v88, %v86
    %v95 = vpack.c.bf16 %v89, %v87
    %v96 = vpack.c.bf16 %v92, %v90
    %v97 = vpack.c.bf16 %v93, %v91
    %v130 = vunpack.c.l.b16 %v19
    %v131 = vunpack.c.l.b16 %v20
    %v132 = vunpack.c.l.b16 %v21
    %v133 = vunpack.c.l.b16 %v22
    %v134 = vunpack.c.l.b16 %v23
    %v135 = vunpack.c.l.b16 %v24
    %v136 = vunpack.c.l.b16 %v25
    %v137 = vunpack.c.l.b16 %v26
    %v138 = vunpack.c.l.b16 %v27
    %v139 = vunpack.c.l.b16 %v28
    %v140 = vunpack.c.l.b16 %v29
    %v141 = vunpack.c.l.b16 %v30
    %v142 = vunpack.c.l.b16 %v31
    %v143 = vunpack.c.l.b16 %v32
    %v144 = vunpack.c.l.b16 %v33
    %v145 = vunpack.c.l.b16 %v34
    %v146 = vunpack.c.l.b16 %v35
    %v147 = vunpack.c.l.b16 %v36
    %v148 = vunpack.c.l.b16 %v37
    %v149 = vunpack.c.l.b16 %v38
    %v150 = vunpack.c.l.b16 %v39
    %v151 = vunpack.c.l.b16 %v40
    %v152 = vunpack.c.l.b16 %v41
    %v153 = vunpack.c.l.b16 %v42
    %v154 = vunpack.c.l.b16 %v43
    %v155 = vunpack.c.l.b16 %v44
    %v156 = vunpack.c.l.b16 %v45
    %v157 = vunpack.c.l.b16 %v46
    %v158 = vunpack.c.l.b16 %v47
    %v159 = vunpack.c.l.b16 %v48
    %v160 = vunpack.c.l.b16 %v49
    %v161 = vunpack.c.l.b16 %v50
    %v162 = vpack.c.b16 %v131, %v130
    %v163 = vpack.c.b16 %v133, %v132
    %v164 = vpack.c.b16 %v135, %v134
    %v165 = vpack.c.b16 %v137, %v136
    %v166 = vpack.c.b16 %v139, %v138
    %v167 = vpack.c.b16 %v141, %v140
    %v168 = vpack.c.b16 %v143, %v142
    %v169 = vpack.c.b16 %v145, %v144
    %v170 = vpack.c.b16 %v147, %v146
    %v171 = vpack.c.b16 %v149, %v148
    %v172 = vpack.c.b16 %v151, %v150
    %v173 = vpack.c.b16 %v153, %v152
    %v174 = vpack.c.b16 %v155, %v154
    %v175 = vpack.c.b16 %v157, %v156
    %v176 = vpack.c.b16 %v159, %v158
    %v177 = vpack.c.b16 %v161, %v160
    %194 = vmatprep.subr.bf16.mxu0 0
    %195 = vmatpush1.bf16.msra.mxu0 %v162
    %196 = vmatprep.subr.bf16.mxu0 0
    %197 = vmatpush1.bf16.msra.mxu0 %v163
    %198 = vmatprep.subr.bf16.mxu0 0
    %199 = vmatpush1.bf16.msra.mxu0 %v164
    %200 = vmatprep.subr.bf16.mxu0 0
    %201 = vmatpush1.bf16.msra.mxu0 %v165
    %202 = vmatprep.subr.bf16.mxu0 0
    %203 = vmatpush1.bf16.msra.mxu0 %v166
    %204 = vmatprep.subr.bf16.mxu0 0
    %205 = vmatpush1.bf16.msra.mxu0 %v167
    %206 = vmatprep.subr.bf16.mxu0 0
    %207 = vmatpush1.bf16.msra.mxu0 %v168
    %208 = vmatprep.subr.bf16.mxu0 0
    %209 = vmatpush1.bf16.msra.mxu0 %v169
    %210 = vmatprep.subr.bf16.mxu0 0
    %211 = vmatpush1.bf16.msra.mxu0 %v170
    %212 = vmatprep.subr.bf16.mxu0 0
    %213 = vmatpush1.bf16.msra.mxu0 %v171
    %214 = vmatprep.subr.bf16.mxu0 0
    %215 = vmatpush1.bf16.msra.mxu0 %v172
    %216 = vmatprep.subr.bf16.mxu0 0
    %217 = vmatpush1.bf16.msra.mxu0 %v173
    %218 = vmatprep.subr.bf16.mxu0 0
    %219 = vmatpush1.bf16.msra.mxu0 %v174
    %220 = vmatprep.subr.bf16.mxu0 0
    %221 = vmatpush1.bf16.msra.mxu0 %v175
    %222 = vmatprep.subr.bf16.mxu0 0
    %223 = vmatpush1.bf16.msra.mxu0 %v176
    %224 = vmatprep.subr.bf16.mxu0 0
    %225 = vmatpush1.bf16.msra.mxu0 %v177
    %226 = vmatprep.mubr.bf16.mxu0 %v95
    %227 = vmatmul.mubr.bf16.gmra.mrb[0].mxu0 %v94
    %v228 = vpop.f32.mrb[0].mxu0
    %v229 = vadd.f32 0.0, %v228
    %v230 = vpop.f32.mrb[0].mxu0
    %v231 = vpop.f32.mrb[0].mxu0
    %v232 = vadd.f32 0.0, %v231
    %v233 = vpop.f32.mrb[0].mxu0
    %234 = vmatprep.mubr.bf16.mxu0 %v97
    %235 = vmatmul.mubr.bf16.gmra.mrb[0].mxu0 %v96
    %v236 = vpop.f32.mrb[0].mxu0
    %v237 = vadd.f32 0.0, %v236
    %v238 = vpop.f32.mrb[0].mxu0
    %v239 = vpop.f32.mrb[0].mxu0
    %v240 = vadd.f32 0.0, %v239
    %v241 = vpop.f32.mrb[0].mxu0
    %242 = vdwg.mxu0
    %v243 = vpack.c.bf16 %v232, %v229
    %v244 = vpack.c.bf16 %v240, %v237
    %vm245 = vcmask 261120
    %246 = vst.msk [vmem:[#allocation2] sm:$0xff] %vm245, %v243
    %247 = vst.msk [vmem:[#allocation2 + $0x8] sm:$0xff] %vm245, %v244
    %248 = vset.pattern.permute.xlu0 1
    %249 = vperm.xlu0 %248, %v51
    %v250 = vpop.permute.xlu0 %249
    %251 = vset.pattern.permute.xlu0 1
    %252 = vperm.xlu0 %251, %v52
    %v253 = vpop.permute.xlu0 %252
    %254 = vset.pattern.permute.xlu0 1
    %255 = vperm.xlu0 %254, %v53
    %v256 = vpop.permute.xlu0 %255
    %257 = vset.pattern.permute.xlu0 1
    %258 = vperm.xlu0 %257, %v54
    %v259 = vpop.permute.xlu0 %258
    %vm260 = vcmp.eq.s32.totalorder %v56, %v250
    %vm261 = vcmp.eq.s32.totalorder %v57, %v250
    %vm262 = vcmp.eq.s32.totalorder %v56, %v253
    %vm263 = vcmp.eq.s32.totalorder %v57, %v253
    %vm264 = vcmp.eq.s32.totalorder %v56, %v256
    %vm265 = vcmp.eq.s32.totalorder %v57, %v256
    %vm266 = vcmp.eq.s32.totalorder %v56, %v259
    %vm267 = vcmp.eq.s32.totalorder %v57, %v259
    %v268 = vsel %vm260, 1, 0
    %v269 = vsel %vm261, 1, 0
    %v270 = vsel %vm262, 1, 0
    %v271 = vsel %vm263, 1, 0
    %v272 = vsel %vm264, 1, 0
    %v273 = vsel %vm265, 1, 0
    %v274 = vsel %vm266, 1, 0
    %v275 = vsel %vm267, 1, 0
    %v276 = vcvt.s32.f32 %v268
    %v277 = vcvt.s32.f32 %v269
    %v278 = vcvt.s32.f32 %v270
    %v279 = vcvt.s32.f32 %v271
    %v280 = vcvt.s32.f32 %v272
    %v281 = vcvt.s32.f32 %v273
    %v282 = vcvt.s32.f32 %v274
    %v283 = vcvt.s32.f32 %v275
    %v284 = vpack.c.bf16 %v278, %v276
    %v285 = vpack.c.bf16 %v279, %v277
    %v286 = vpack.c.bf16 %v282, %v280
    %v287 = vpack.c.bf16 %v283, %v281
    %288 = vmatprep.subr.bf16.mxu0 0
    %289 = vmatpush1.bf16.msra.mxu0 %v162
    %290 = vmatprep.subr.bf16.mxu0 0
    %291 = vmatpush1.bf16.msra.mxu0 %v163
    %292 = vmatprep.subr.bf16.mxu0 0
    %293 = vmatpush1.bf16.msra.mxu0 %v164
    %294 = vmatprep.subr.bf16.mxu0 0
    %295 = vmatpush1.bf16.msra.mxu0 %v165
    %296 = vmatprep.subr.bf16.mxu0 0
    %297 = vmatpush1.bf16.msra.mxu0 %v166
    %298 = vmatprep.subr.bf16.mxu0 0
    %299 = vmatpush1.bf16.msra.mxu0 %v167
    %300 = vmatprep.subr.bf16.mxu0 0
    %301 = vmatpush1.bf16.msra.mxu0 %v168
    %302 = vmatprep.subr.bf16.mxu0 0
    %303 = vmatpush1.bf16.msra.mxu0 %v169
    %304 = vmatprep.subr.bf16.mxu0 0
    %305 = vmatpush1.bf16.msra.mxu0 %v170
    %306 = vmatprep.subr.bf16.mxu0 0
    %307 = vmatpush1.bf16.msra.mxu0 %v171
    %308 = vmatprep.subr.bf16.mxu0 0
    %309 = vmatpush1.bf16.msra.mxu0 %v172
    %310 = vmatprep.subr.bf16.mxu0 0
    %311 = vmatpush1.bf16.msra.mxu0 %v173
    %312 = vmatprep.subr.bf16.mxu0 0
    %313 = vmatpush1.bf16.msra.mxu0 %v174
    %314 = vmatprep.subr.bf16.mxu0 0
    %315 = vmatpush1.bf16.msra.mxu0 %v175
    %316 = vmatprep.subr.bf16.mxu0 0
    %317 = vmatpush1.bf16.msra.mxu0 %v176
    %318 = vmatprep.subr.bf16.mxu0 0
    %319 = vmatpush1.bf16.msra.mxu0 %v177
    %320 = vmatprep.mubr.bf16.mxu0 %v285
    %321 = vmatmul.mubr.bf16.gmra.mrb[0].mxu0 %v284
    %v322 = vpop.f32.mrb[0].mxu0
    %v323 = vadd.f32 0.0, %v322
    %v324 = vpop.f32.mrb[0].mxu0
    %v325 = vpop.f32.mrb[0].mxu0
    %v326 = vadd.f32 0.0, %v325
    %v327 = vpop.f32.mrb[0].mxu0
    %328 = vmatprep.mubr.bf16.mxu0 %v287
    %329 = vmatmul.mubr.bf16.gmra.mrb[0].mxu0 %v286
    %v330 = vpop.f32.mrb[0].mxu0
    %v331 = vadd.f32 0.0, %v330
    %v332 = vpop.f32.mrb[0].mxu0
    %v333 = vpop.f32.mrb[0].mxu0
    %v334 = vadd.f32 0.0, %v333
    %v335 = vpop.f32.mrb[0].mxu0
    %336 = vdwg.mxu0
    %v337 = vpack.c.bf16 %v326, %v323
    %v338 = vpack.c.bf16 %v334, %v331
    %341 = vrot.lane.b32.xlu0 %v337, 32
    %v342 = vpop.permute.xlu0 %341
    %343 = vrot.lane.b32.xlu0 %v338, 32
    %v344 = vpop.permute.xlu0 %343
    %vm347 = vcmask 523520
    %348 = vst.msk [vmem:[#allocation2] sm:$0xff] %vm347, %v342
    %349 = vst.msk [vmem:[#allocation2 + $0x8] sm:$0xff] %vm347, %v344
    %350 = vset.pattern.permute.xlu0 2
    %351 = vperm.xlu0 %350, %v51
    %v352 = vpop.permute.xlu0 %351
    %353 = vset.pattern.permute.xlu0 2
    %354 = vperm.xlu0 %353, %v52
    %v355 = vpop.permute.xlu0 %354
    %356 = vset.pattern.permute.xlu0 2
    %357 = vperm.xlu0 %356, %v53
    %v358 = vpop.permute.xlu0 %357
    %359 = vset.pattern.permute.xlu0 2
    %360 = vperm.xlu0 %359, %v54
    %v361 = vpop.permute.xlu0 %360
    %vm362 = vcmp.eq.s32.totalorder %v56, %v352
    %vm363 = vcmp.eq.s32.totalorder %v57, %v352
    %vm364 = vcmp.eq.s32.totalorder %v56, %v355
    %vm365 = vcmp.eq.s32.totalorder %v57, %v355
    %vm366 = vcmp.eq.s32.totalorder %v56, %v358
    %vm367 = vcmp.eq.s32.totalorder %v57, %v358
    %vm368 = vcmp.eq.s32.totalorder %v56, %v361
    %vm369 = vcmp.eq.s32.totalorder %v57, %v361
    %v370 = vsel %vm362, 1, 0
    %v371 = vsel %vm363, 1, 0
    %v372 = vsel %vm364, 1, 0
    %v373 = vsel %vm365, 1, 0
    %v374 = vsel %vm366, 1, 0
    %v375 = vsel %vm367, 1, 0
    %v376 = vsel %vm368, 1, 0
    %v377 = vsel %vm369, 1, 0
    %v378 = vcvt.s32.f32 %v370
    %v379 = vcvt.s32.f32 %v371
    %v380 = vcvt.s32.f32 %v372
    %v381 = vcvt.s32.f32 %v373
    %v382 = vcvt.s32.f32 %v374
    %v383 = vcvt.s32.f32 %v375
    %v384 = vcvt.s32.f32 %v376
    %v385 = vcvt.s32.f32 %v377
    %v386 = vpack.c.bf16 %v380, %v378
    %v387 = vpack.c.bf16 %v381, %v379
    %v388 = vpack.c.bf16 %v384, %v382
    %v389 = vpack.c.bf16 %v385, %v383
    %390 = vmatprep.subr.bf16.mxu0 0
    %391 = vmatpush1.bf16.msra.mxu0 %v162
    %392 = vmatprep.subr.bf16.mxu0 0
    %393 = vmatpush1.bf16.msra.mxu0 %v163
    %394 = vmatprep.subr.bf16.mxu0 0
    %395 = vmatpush1.bf16.msra.mxu0 %v164
    %396 = vmatprep.subr.bf16.mxu0 0
    %397 = vmatpush1.bf16.msra.mxu0 %v165
    %398 = vmatprep.subr.bf16.mxu0 0
    %399 = vmatpush1.bf16.msra.mxu0 %v166
    %400 = vmatprep.subr.bf16.mxu0 0
    %401 = vmatpush1.bf16.msra.mxu0 %v167
    %402 = vmatprep.subr.bf16.mxu0 0
    %403 = vmatpush1.bf16.msra.mxu0 %v168
    %404 = vmatprep.subr.bf16.mxu0 0
    %405 = vmatpush1.bf16.msra.mxu0 %v169
    %406 = vmatprep.subr.bf16.mxu0 0
    %407 = vmatpush1.bf16.msra.mxu0 %v170
    %408 = vmatprep.subr.bf16.mxu0 0
    %409 = vmatpush1.bf16.msra.mxu0 %v171
    %410 = vmatprep.subr.bf16.mxu0 0
    %411 = vmatpush1.bf16.msra.mxu0 %v172
    %412 = vmatprep.subr.bf16.mxu0 0
    %413 = vmatpush1.bf16.msra.mxu0 %v173
    %414 = vmatprep.subr.bf16.mxu0 0
    %415 = vmatpush1.bf16.msra.mxu0 %v174
    %416 = vmatprep.subr.bf16.mxu0 0
    %417 = vmatpush1.bf16.msra.mxu0 %v175
    %418 = vmatprep.subr.bf16.mxu0 0
    %419 = vmatpush1.bf16.msra.mxu0 %v176
    %420 = vmatprep.subr.bf16.mxu0 0
    %421 = vmatpush1.bf16.msra.mxu0 %v177
    %422 = vmatprep.mubr.bf16.mxu0 %v387
    %423 = vmatmul.mubr.bf16.gmra.mrb[0].mxu0 %v386
    %v424 = vpop.f32.mrb[0].mxu0
    %v425 = vadd.f32 0.0, %v424
    %v426 = vpop.f32.mrb[0].mxu0
    %v427 = vpop.f32.mrb[0].mxu0
    %v428 = vadd.f32 0.0, %v427
    %v429 = vpop.f32.mrb[0].mxu0
    %430 = vmatprep.mubr.bf16.mxu0 %v389
    %431 = vmatmul.mubr.bf16.gmra.mrb[0].mxu0 %v388
    %v432 = vpop.f32.mrb[0].mxu0
    %v433 = vadd.f32 0.0, %v432
    %v434 = vpop.f32.mrb[0].mxu0
    %v435 = vpop.f32.mrb[0].mxu0
    %v436 = vadd.f32 0.0, %v435
    %v437 = vpop.f32.mrb[0].mxu0
    %438 = vdwg.mxu0
    %v439 = vpack.c.bf16 %v428, %v425
    %v440 = vpack.c.bf16 %v436, %v433
    %443 = vrot.lane.b32.xlu0 %v439, 64
    %v444 = vpop.permute.xlu0 %443
    %445 = vrot.lane.b32.xlu0 %v440, 64
    %v446 = vpop.permute.xlu0 %445
    %vm449 = vcmask 785920
    %450 = vst.msk [vmem:[#allocation2] sm:$0xff] %vm449, %v444
    %451 = vst.msk [vmem:[#allocation2 + $0x8] sm:$0xff] %vm449, %v446
    %452 = vset.pattern.permute.xlu0 3
    %453 = vperm.xlu0 %452, %v51
    %v454 = vpop.permute.xlu0 %453
    %455 = vset.pattern.permute.xlu0 3
    %456 = vperm.xlu0 %455, %v52
    %v457 = vpop.permute.xlu0 %456
    %458 = vset.pattern.permute.xlu0 3
    %459 = vperm.xlu0 %458, %v53
    %v460 = vpop.permute.xlu0 %459
    %461 = vset.pattern.permute.xlu0 3
    %462 = vperm.xlu0 %461, %v54
    %v463 = vpop.permute.xlu0 %462
    %vm464 = vcmp.eq.s32.totalorder %v56, %v454
    %vm465 = vcmp.eq.s32.totalorder %v57, %v454
    %vm466 = vcmp.eq.s32.totalorder %v56, %v457
    %vm467 = vcmp.eq.s32.totalorder %v57, %v457
    %vm468 = vcmp.eq.s32.totalorder %v56, %v460
    %vm469 = vcmp.eq.s32.totalorder %v57, %v460
    %vm470 = vcmp.eq.s32.totalorder %v56, %v463
    %vm471 = vcmp.eq.s32.totalorder %v57, %v463
    %v472 = vsel %vm464, 1, 0
    %v473 = vsel %vm465, 1, 0
    %v474 = vsel %vm466, 1, 0
    %v475 = vsel %vm467, 1, 0
    %v476 = vsel %vm468, 1, 0
    %v477 = vsel %vm469, 1, 0
    %v478 = vsel %vm470, 1, 0
    %v479 = vsel %vm471, 1, 0
    %v480 = vcvt.s32.f32 %v472
    %v481 = vcvt.s32.f32 %v473
    %v482 = vcvt.s32.f32 %v474
    %v483 = vcvt.s32.f32 %v475
    %v484 = vcvt.s32.f32 %v476
    %v485 = vcvt.s32.f32 %v477
    %v486 = vcvt.s32.f32 %v478
    %v487 = vcvt.s32.f32 %v479
    %v488 = vpack.c.bf16 %v482, %v480
    %v489 = vpack.c.bf16 %v483, %v481
    %v490 = vpack.c.bf16 %v486, %v484
    %v491 = vpack.c.bf16 %v487, %v485
    %492 = vmatprep.subr.bf16.mxu0 0
    %493 = vmatpush1.bf16.msra.mxu0 %v162
    %494 = vmatprep.subr.bf16.mxu0 0
    %495 = vmatpush1.bf16.msra.mxu0 %v163
    %496 = vmatprep.subr.bf16.mxu0 0
    %497 = vmatpush1.bf16.msra.mxu0 %v164
    %498 = vmatprep.subr.bf16.mxu0 0
    %499 = vmatpush1.bf16.msra.mxu0 %v165
    %500 = vmatprep.subr.bf16.mxu0 0
    %501 = vmatpush1.bf16.msra.mxu0 %v166
    %502 = vmatprep.subr.bf16.mxu0 0
    %503 = vmatpush1.bf16.msra.mxu0 %v167
    %504 = vmatprep.subr.bf16.mxu0 0
    %505 = vmatpush1.bf16.msra.mxu0 %v168
    %506 = vmatprep.subr.bf16.mxu0 0
    %507 = vmatpush1.bf16.msra.mxu0 %v169
    %508 = vmatprep.subr.bf16.mxu0 0
    %509 = vmatpush1.bf16.msra.mxu0 %v170
    %510 = vmatprep.subr.bf16.mxu0 0
    %511 = vmatpush1.bf16.msra.mxu0 %v171
    %512 = vmatprep.subr.bf16.mxu0 0
    %513 = vmatpush1.bf16.msra.mxu0 %v172
    %514 = vmatprep.subr.bf16.mxu0 0
    %515 = vmatpush1.bf16.msra.mxu0 %v173
    %516 = vmatprep.subr.bf16.mxu0 0
    %517 = vmatpush1.bf16.msra.mxu0 %v174
    %518 = vmatprep.subr.bf16.mxu0 0
    %519 = vmatpush1.bf16.msra.mxu0 %v175
    %520 = vmatprep.subr.bf16.mxu0 0
    %521 = vmatpush1.bf16.msra.mxu0 %v176
    %522 = vmatprep.subr.bf16.mxu0 0
    %523 = vmatpush1.bf16.msra.mxu0 %v177
    %524 = vmatprep.mubr.bf16.mxu0 %v489
    %525 = vmatmul.mubr.bf16.gmra.mrb[0].mxu0 %v488
    %v526 = vpop.f32.mrb[0].mxu0
    %v527 = vadd.f32 0.0, %v526
    %v528 = vpop.f32.mrb[0].mxu0
    %v529 = vpop.f32.mrb[0].mxu0
    %v530 = vadd.f32 0.0, %v529
    %v531 = vpop.f32.mrb[0].mxu0
    %532 = vmatprep.mubr.bf16.mxu0 %v491
    %533 = vmatmul.mubr.bf16.gmra.mrb[0].mxu0 %v490
    %v534 = vpop.f32.mrb[0].mxu0
    %v535 = vadd.f32 0.0, %v534
    %v536 = vpop.f32.mrb[0].mxu0
    %v537 = vpop.f32.mrb[0].mxu0
    %v538 = vadd.f32 0.0, %v537
    %v539 = vpop.f32.mrb[0].mxu0
    %540 = vdwg.mxu0
    %v541 = vpack.c.bf16 %v530, %v527
    %v542 = vpack.c.bf16 %v538, %v535
    %545 = vrot.lane.b32.xlu0 %v541, 96
    %v546 = vpop.permute.xlu0 %545
    %547 = vrot.lane.b32.xlu0 %v542, 96
    %v548 = vpop.permute.xlu0 %547
    %vm551 = vcmask 1048320
    %552 = vst.msk [vmem:[#allocation2] sm:$0xff] %vm551, %v546
    %553 = vst.msk [vmem:[#allocation2 + $0x8] sm:$0xff] %vm551, %v548
    %v554 = vld [vmem:[#allocation2] sm:$0xff]
    %v555 = vld [vmem:[#allocation2 + $0x8] sm:$0xff]
    %v556 = vld [vmem:[%s2] sm:$0xf]
    %v557 = vld [vmem:[%s2 + $0x4] sm:$0xf]
    %v558 = vld [vmem:[%s2 + $0x8] sm:$0xf]
    %v559 = vld [vmem:[%s2 + $0xc] sm:$0xf]
    %v560 = vld [vmem:[%s2 + $0x10] sm:$0xf]
    %v561 = vld [vmem:[%s2 + $0x14] sm:$0xf]
    %v562 = vld [vmem:[%s2 + $0x18] sm:$0xf]
    %v563 = vld [vmem:[%s2 + $0x1c] sm:$0xf]
    %v564 = vld [vmem:[%s2 + $0x20] sm:$0xf]
    %v565 = vld [vmem:[%s2 + $0x24] sm:$0xf]
    %v566 = vld [vmem:[%s2 + $0x28] sm:$0xf]
    %v567 = vld [vmem:[%s2 + $0x2c] sm:$0xf]
    %v568 = vld [vmem:[%s2 + $0x30] sm:$0xf]
    %v569 = vld [vmem:[%s2 + $0x34] sm:$0xf]
    %v570 = vld [vmem:[%s2 + $0x38] sm:$0xf]
    %v571 = vld [vmem:[%s2 + $0x3c] sm:$0xf]
    %v572 = vld [vmem:[%s3] sm:$0x1]
    %v574 = vlaneseq
    %v575 = vshrl.u32 %v574, 7
    %v576 = vsub.s32 0, %v575
    %v577 = vrot.slane %v572, %v576
    %v595 = vunpack.c.l.b16 %v556
    %v596 = vunpack.c.l.b16 %v557
    %v597 = vunpack.c.l.b16 %v558
    %v598 = vunpack.c.l.b16 %v559
    %v599 = vunpack.c.l.b16 %v560
    %v600 = vunpack.c.l.b16 %v561
    %v601 = vunpack.c.l.b16 %v562
    %v602 = vunpack.c.l.b16 %v563
    %v603 = vunpack.c.l.b16 %v564
    %v604 = vunpack.c.l.b16 %v565
    %v605 = vunpack.c.l.b16 %v566
    %v606 = vunpack.c.l.b16 %v567
    %v607 = vunpack.c.l.b16 %v568
    %v608 = vunpack.c.l.b16 %v569
    %v609 = vunpack.c.l.b16 %v570
    %v610 = vunpack.c.l.b16 %v571
    %v611 = vpack.c.b16 %v596, %v595
    %v612 = vpack.c.b16 %v598, %v597
    %v613 = vpack.c.b16 %v600, %v599
    %v614 = vpack.c.b16 %v602, %v601
    %v615 = vpack.c.b16 %v604, %v603
    %v616 = vpack.c.b16 %v606, %v605
    %v617 = vpack.c.b16 %v608, %v607
    %v618 = vpack.c.b16 %v610, %v609
    %627 = vmatprep.subr.bf16.mxu0 0
    %628 = vmatpush1.bf16.msra.mxu0 %v611
    %629 = vmatprep.subr.bf16.mxu0 0
    %630 = vmatpush1.bf16.msra.mxu0 %v612
    %631 = vmatprep.subr.bf16.mxu0 0
    %632 = vmatpush1.bf16.msra.mxu0 %v613
    %633 = vmatprep.subr.bf16.mxu0 0
    %634 = vmatpush1.bf16.msra.mxu0 %v614
    %635 = vmatprep.subr.bf16.mxu0 0
    %636 = vmatpush1.bf16.msra.mxu0 %v615
    %637 = vmatprep.subr.bf16.mxu0 0
    %638 = vmatpush1.bf16.msra.mxu0 %v616
    %639 = vmatprep.subr.bf16.mxu0 0
    %640 = vmatpush1.bf16.msra.mxu0 %v617
    %641 = vmatprep.subr.bf16.mxu0 0
    %642 = vmatpush1.bf16.msra.mxu0 %v618
    %643 = vmatprep.subr.bf16.mxu0 0
    %644 = vmatpush1.bf16.msra.mxu0 0
    %645 = vmatprep.subr.bf16.mxu0 0
    %646 = vmatpush1.bf16.msra.mxu0 0
    %647 = vmatprep.subr.bf16.mxu0 0
    %648 = vmatpush1.bf16.msra.mxu0 0
    %649 = vmatprep.subr.bf16.mxu0 0
    %650 = vmatpush1.bf16.msra.mxu0 0
    %651 = vmatprep.subr.bf16.mxu0 0
    %652 = vmatpush1.bf16.msra.mxu0 0
    %653 = vmatprep.subr.bf16.mxu0 0
    %654 = vmatpush1.bf16.msra.mxu0 0
    %655 = vmatprep.subr.bf16.mxu0 0
    %656 = vmatpush1.bf16.msra.mxu0 0
    %657 = vmatprep.subr.bf16.mxu0 0
    %658 = vmatpush1.bf16.msra.mxu0 0
    %659 = vmatprep.mubr.bf16.mxu0 0
    %660 = vmatmul.mubr.bf16.gmra.mrb[0].mxu0 %v554
    %v661 = vpop.f32.mrb[0].mxu0
    %v662 = vadd.f32 %v577, %v661
    %v663 = vpop.f32.mrb[0].mxu0
    %v664 = vpop.f32.mrb[0].mxu0
    %v665 = vadd.f32 %v577, %v664
    %v666 = vpop.f32.mrb[0].mxu0
    %667 = vmatprep.mubr.bf16.mxu0 0
    %668 = vmatmul.mubr.bf16.gmra.mrb[0].mxu0 %v555
    %v669 = vpop.f32.mrb[0].mxu0
    %v670 = vadd.f32 %v577, %v669
    %v671 = vpop.f32.mrb[0].mxu0
    %v672 = vpop.f32.mrb[0].mxu0
    %v673 = vadd.f32 %v577, %v672
    %v674 = vpop.f32.mrb[0].mxu0
    %675 = vdwg.mxu0
    %v676 = vmax.f32 %v662, 0.0
    %v677 = vmax.f32 %v665, 0.0
    %v678 = vmax.f32 %v670, 0.0
    %v679 = vmax.f32 %v673, 0.0
    %v680 = vpack.c.bf16 %v677, %v676
    %v681 = vpack.c.bf16 %v679, %v678
    %v684 = vunpack.c.l.b16 %v680
    %v685 = vunpack.c.h.b16 %v680
    %v686 = vunpack.c.l.b16 %v681
    %v687 = vunpack.c.h.b16 %v681
    %v688 = vpack.c.b16 %v684, %v684
    %v689 = vpack.c.b16 %v685, %v685
    %v690 = vpack.c.b16 %v686, %v686
    %v691 = vpack.c.b16 %v687, %v687
    %696 = vst [vmem:[#allocation3] sm:$0xf] %v688
    %697 = vst [vmem:[#allocation3 + $0x4] sm:$0xf] %v689
    %698 = vst [vmem:[#allocation3 + $0x8] sm:$0xf] %v690
    %699 = vst [vmem:[#allocation3 + $0xc] sm:$0xf] %v691
    // Predicated region
    $region18: #{tpu_custom_call.1} parent=1 // pred_check
      _
    $region19: #{tpu_custom_call.1} parent=1 // pred_check_branch
      %701 = sbr.rel (0) target = $region21
    $region20: #{tpu_custom_call.1} parent=1 // pred_region
      %s703 = ssub.s32 256, 256
      %704 = vsyncadd [#allocation4], %s703
      %s705 = sshll.u32 [#allocation3], 4
      %s706 = int_to_ptr.vmem [resolvable:$true] %s705
      %711 = dma.vmem_to_hbm [thread:$0]  %s706, 256, %s4, [#allocation4], 64, 64, 4
    $region21: #{tpu_custom_call.1} parent=1 // pred_fallthru
      _
    // Predicated region
    $region22: #{tpu_custom_call.1} parent=1 // pred_check
      _
    $region23: #{tpu_custom_call.1} parent=1 // pred_check_branch
      %713 = sbr.rel (0) target = $region25
    $region24: #{tpu_custom_call.1} parent=1 // pred_region
      %714 = dma.done [#allocation4], 256
    $region25: #{tpu_custom_call.1} parent=1 // pred_fallthru
      _
    %715 = vsyncpa [#allocation4], 1

</llo_original>
